<compile_context>
chip_gen: v7x
topology: tpu7x:2x2x1
jax: 0.10.0
libtpu: 0.0.40
codegen_flags: <defaults>
</compile_context>

<pallas_src>
import jax
import jax.numpy as jnp
from jax.experimental import pallas as pl
from jax.experimental.pallas import tpu as pltpu

_LANE = 128
_TARGET_BLOCK_BYTES = 8 * 1024 * 1024        # ~8 MiB/block (v7x-friendly), fine on v5e/v6e
_VMEM_LIMIT_BYTES = 40 * 1024 * 1024         # 2 io x 2 buffers x 8 MiB = 32 MiB + headroom
_RAGGED_SINGLE_BLOCK_BYTES = 512 * 1024      # ragged arrays up to 512 KiB run as one block


def _relu_kernel(x_ref, o_ref):
    # Single VPU elementwise pass over the block.
    o_ref[...] = jnp.maximum(x_ref[...], 0)


def _run_relu_2d(x2d: jax.Array, *, alias: bool, cost_n: int, itemsize: int) -> jax.Array:
    """Tiled elementwise ReLU over a 2-D (rows, width) slab."""
    rows, width = x2d.shape
    dtype = x2d.dtype
    # Packed sublane multiple: 8 for 4-byte, 16 for 2-byte, 32 for 1-byte dtypes.
    row_align = max(8, 32 // itemsize)

    bytes_per_row = width * itemsize
    target_rows = max(row_align, _TARGET_BLOCK_BYTES // bytes_per_row)
    target_rows -= target_rows % row_align

    if rows <= row_align:
        # Tiny slab: one full-extent block (legal even when rows % row_align != 0).
        tile_rows = rows
    elif rows <= target_rows:
        # Whole slab would fit one target block; split into >=2 grid steps so the
        # "parallel" axis shards across both TensorCores on v7x.
        half = -(-rows // 2)
        tile_rows = min(rows, ((half + row_align - 1) // row_align) * row_align)
    else:
        tile_rows = target_rows

    grid = (pl.cdiv(rows, tile_rows),)

    extra_kwargs = {}
    if alias:
        # Mimic nn.ReLU(inplace=True): reuse the input HBM buffer for the output
        # (effective when the caller donates the input).
        extra_kwargs["input_output_aliases"] = {0: 0}

    return pl.pallas_call(
        _relu_kernel,
        out_shape=jax.ShapeDtypeStruct((rows, width), dtype),
        grid_spec=pltpu.PrefetchScalarGridSpec(
            num_scalar_prefetch=0,
            grid=grid,
            in_specs=[pl.BlockSpec((tile_rows, width), lambda i: (i, 0))],
            out_specs=pl.BlockSpec((tile_rows, width), lambda i: (i, 0)),
        ),
        compiler_params=pltpu.CompilerParams(
            dimension_semantics=("parallel",),   # shards the 1-D grid across TCs on v7x
            vmem_limit_bytes=_VMEM_LIMIT_BYTES,
        ),
        cost_estimate=pl.CostEstimate(
            flops=cost_n, transcendentals=0, bytes_accessed=2 * cost_n * itemsize
        ),
        **extra_kwargs,
    )(x2d)


def relu_pallas(x: jax.Array, *, inplace: bool = False) -> jax.Array:
    """Elementwise ReLU via a Pallas TPU kernel (shape- and dtype-preserving)."""
    orig_shape = x.shape
    n = x.size
    if n == 0:
        return x
    itemsize = jnp.dtype(x.dtype).itemsize
    x_flat = jnp.reshape(x, (-1,))  # bitcast reshape for contiguous arrays (free)

    if n % _LANE == 0:
        # Common NN-activation case: pick the widest lane-dense width that divides n.
        width = _LANE
        for w in (1024, 512, 256, 128):
            if n % w == 0:
                width = w
                break
        out2d = _run_relu_2d(
            x_flat.reshape(n // width, width), alias=inplace, cost_n=n, itemsize=itemsize
        )
        return out2d.reshape(orig_shape)

    if n * itemsize <= _RAGGED_SINGLE_BLOCK_BYTES:
        # Ragged but small: one full-extent (1, n) block. No pad/slice copies;
        # masked lane stores cover the ragged tail and aliasing still applies.
        out2d = _run_relu_2d(
            x_flat.reshape(1, n), alias=inplace, cost_n=n, itemsize=itemsize
        )
        return out2d.reshape(orig_shape)

    # Large ragged sizes (rare): stream the 128-aligned prefix through the kernel
    # and handle the <128-element tail with a tiny elementwise op, then stitch.
    # TODO(synk): fold the tail into the kernel via a scalar-prefetched length +
    # masked store to avoid the prefix/concat copies entirely.
    main_elems = (n // _LANE) * _LANE
    main2d = x_flat[:main_elems].reshape(main_elems // _LANE, _LANE)
    tail = x_flat[main_elems:]
    main_out = _run_relu_2d(main2d, alias=False, cost_n=main_elems, itemsize=itemsize)
    out_flat = jnp.concatenate([main_out.reshape(-1), jnp.maximum(tail, 0)])
    return out_flat.reshape(orig_shape)


class ReLUModule:
    """Mirror of the PyTorch module: __init__(inplace), forward(x)."""

    def __init__(self, inplace: bool):
        # `inplace` has no mutation semantics in JAX; it is mapped to
        # input/output buffer aliasing (effective when the input is donated).
        self.inplace = inplace

    def __call__(self, x):
        return relu_pallas(x, inplace=self.inplace)


if __name__ == "__main__":
    key = jax.random.PRNGKey(0)
    k1, k2, k3 = jax.random.split(key, 3)

    # Primary check: small NCHW input consistent with conv-activation usage.
    x = jax.random.normal(k1, (2, 4, 16, 16), dtype=jnp.float32)
    mod = ReLUModule(inplace=False)
    y = jax.block_until_ready(mod(x))
    assert y.shape == x.shape and y.dtype == x.dtype
    assert bool(jnp.allclose(y, jnp.maximum(x, 0.0))), "Pallas ReLU mismatch (f32 NCHW)"

    # Ragged size (n % 128 != 0) + inplace/aliasing path: zero-copy single block.
    x2 = jax.random.normal(k2, (3, 5, 7), dtype=jnp.float32)
    y2 = jax.block_until_ready(ReLUModule(inplace=True)(x2))
    assert y2.shape == x2.shape and y2.dtype == x2.dtype
    assert bool(jnp.allclose(y2, jnp.maximum(x2, 0.0))), "Pallas ReLU mismatch (ragged)"

    # bf16, lane-dense width 1024, >=2 grid steps (dual-TC sharding path).
    x3 = jax.random.normal(k3, (4, 8, 32, 32), dtype=jnp.bfloat16)
    y3 = jax.block_until_ready(ReLUModule(inplace=False)(x3))
    assert y3.shape == x3.shape and y3.dtype == x3.dtype
    assert bool(jnp.array_equal(y3, jnp.maximum(x3, jnp.bfloat16(0)))), "Pallas ReLU mismatch (bf16)"

    print("KERNEL_OK")
</pallas_src>

<mosaic_0001>
module attributes {stable_mosaic.version = 11 : i64} {
  func.func @_relu_kernel(%arg0: i32, %arg1: memref<2x1024xf32, #tpu.memory_space<vmem>>, %arg2: memref<2x1024xf32, #tpu.memory_space<vmem>>) attributes {dimension_semantics = [#tpu.dimension_semantics<parallel>], iteration_bounds = array<i64: 1>, scalar_prefetch = 0 : i64, scratch_operands = 0 : i64, tpu.core_type = #tpu.core_type<tc>, window_params = [{transform_indices = @transform_0, window_bounds = array<i64: 2, 1024>}, {transform_indices = @transform_1, window_bounds = array<i64: 2, 1024>}]} {
    %c0 = arith.constant 0 : index
    %c0_0 = arith.constant 0 : index
    %0 = vector.load %arg1[%c0, %c0_0] : memref<2x1024xf32, #tpu.memory_space<vmem>>, vector<2x1024xf32>
    %cst = arith.constant 0.000000e+00 : f32
    %1 = vector.broadcast %cst : f32 to vector<2x1024xf32>
    %2 = arith.maximumf %0, %1 : vector<2x1024xf32>
    %c0_1 = arith.constant 0 : index
    %c0_2 = arith.constant 0 : index
    %3 = vector.load %arg2[%c0_1, %c0_2] : memref<2x1024xf32, #tpu.memory_space<vmem>>, vector<2x1024xf32>
    tpu.vector_store %arg2[%c0_1, %c0_2], %2 {strides = array<i32>} : memref<2x1024xf32, #tpu.memory_space<vmem>>, vector<2x1024xf32>,
    return
  }
  func.func @transform_0(%arg0: i32) -> (i32, i32) {
    %c0_i32 = arith.constant 0 : i32
    %c0_i32_0 = arith.constant 0 : i32
    return %arg0, %c0_i32 : i32, i32
  }
  func.func @transform_1(%arg0: i32) -> (i32, i32) {
    %c0_i32 = arith.constant 0 : i32
    %c0_i32_0 = arith.constant 0 : i32
    return %arg0, %c0_i32 : i32, i32
  }
}

</mosaic_0001>

<llo_original>
// kernel: tpu_custom_call.1
$region0: #{tpu_custom_call.1}
  #allocation0 [shape = 'u32[]', space=smem, size = 0x4, offset = 0x4, fixed_abs, tag = 'smem constant byte address 0x4 - core index']
  #allocation1 [shape = 'u32[144,128]{1,0:T(1,128)}', space=vmem, size = 0x12000, scoped, tag = 'internal scratch']
  %s0 = inlined_call_operand.hbm [shape: f32[2,1024], index: 0, kind: input, shape index: {}]
  %s1 = inlined_call_operand.hbm [shape: f32[2,1024], index: 1, kind: output, shape index: {}]
  %s2 = sld [smem:[#allocation0]]
  $region18: #{tpu_custom_call.1} parent=0
    _
  %s4 = ssub.s32 1, %s2
  %s5 = scalar_select 0, %s4, %s2
  $region1: #{tpu_custom_call.1} parent=0
    #allocation2 [shape = 'u8[8192]{0}', space=vmem, size = 0x2000, scoped, tag = 'input window, operand 0, single buffered']
    #allocation3 [shape = 's32[1]{0}', space=sflag, size = 0x4, scoped, tag = 'scoped memory for tpu_custom_call.1']
    #allocation4 [shape = 's32[1]{0}', space=sflag, size = 0x4, scoped, tag = 'scoped memory for tpu_custom_call.1']
    #allocation5 [shape = 'u8[8192]{0}', space=vmem, size = 0x2000, scoped, tag = 'output window, operand 0, single buffered']
    %6 = vsyncpa [#allocation3], 0
    %7 = vsyncpa [#allocation4], 0
    // Predicated region
    $region2: #{tpu_custom_call.1} parent=1 // pred_check
      _
    $region3: #{tpu_custom_call.1} parent=1 // pred_check_branch
      %9 = sbr.rel (0) target = $region5
    $region4: #{tpu_custom_call.1} parent=1 // pred_region
      %s11 = ssub.s32 256, 256
      %12 = vsyncadd [#allocation3], %s11
      %s14 = sshll.u32 [#allocation2], 4
      %s15 = int_to_ptr.vmem [resolvable:$true] %s14
      %17 = dma.hbm_to_vmem [thread:$0]  %s0, 256, %s15, [#allocation3]
    $region5: #{tpu_custom_call.1} parent=1 // pred_fallthru
      _
    // Predicated region
    $region6: #{tpu_custom_call.1} parent=1 // pred_check
      _
    $region7: #{tpu_custom_call.1} parent=1 // pred_check_branch
      %19 = sbr.rel (0) target = $region9
    $region8: #{tpu_custom_call.1} parent=1 // pred_region
      %20 = dma.done [#allocation3], 256
    $region9: #{tpu_custom_call.1} parent=1 // pred_fallthru
      _
    %v21 = vld [vmem:[#allocation2] sm:$0xff]
    %v22 = vld [vmem:[#allocation2 + $0x8] sm:$0xff]
    %v23 = vmax.f32 %v21, 0.0
    %v24 = vmax.f32 %v22, 0.0
    %25 = vst [vmem:[#allocation5] sm:$0xff] %v23
    %26 = vst [vmem:[#allocation5 + $0x8] sm:$0xff] %v24
    // Predicated region
    $region10: #{tpu_custom_call.1} parent=1 // pred_check
      _
    $region11: #{tpu_custom_call.1} parent=1 // pred_check_branch
      %28 = sbr.rel (0) target = $region13
    $region12: #{tpu_custom_call.1} parent=1 // pred_region
      %s30 = ssub.s32 256, 256
      %31 = vsyncadd [#allocation4], %s30
      %s33 = sshll.u32 [#allocation5], 4
      %s34 = int_to_ptr.vmem [resolvable:$true] %s33
      %36 = dma.vmem_to_hbm [thread:$0]  %s34, 256, %s1, [#allocation4]
    $region13: #{tpu_custom_call.1} parent=1 // pred_fallthru
      _
    // Predicated region
    $region14: #{tpu_custom_call.1} parent=1 // pred_check
      _
    $region15: #{tpu_custom_call.1} parent=1 // pred_check_branch
      %38 = sbr.rel (0) target = $region17
    $region16: #{tpu_custom_call.1} parent=1 // pred_region
      %39 = dma.done [#allocation4], 256
    $region17: #{tpu_custom_call.1} parent=1 // pred_fallthru
      _
    %40 = vsyncpa [#allocation3], 1
    %41 = vsyncpa [#allocation4], 1

</llo_original>
